<compile_context>
chip_gen: v5e
topology: v5e:2x2
jax: 0.10.0
libtpu: 0.0.40
codegen_flags: <defaults>
</compile_context>

<pallas_src>
import functools

import jax
import jax.numpy as jnp
from jax.experimental import pallas as pl
from jax.experimental.pallas import tpu as pltpu


def _round_up(x, m):
  return ((x + m - 1) // m) * m


def _head_linear_kernel(x_ref, w_ref, b_ref, out_ref, *, use_silu):
  """One grid step == (head h, output tile j) of a per-head linear layer.

  x_ref  : (1, B, K)   bf16  input activations for head h (or shared)
  w_ref  : (1, K, T)   bf16  weight tile
  b_ref  : (1, 1, T)   f32   bias tile
  out_ref: (1, B, T)   bf16/f32  output tile
  """
  y = jnp.dot(x_ref[0], w_ref[0], preferred_element_type=jnp.float32)  # (B, T) f32
  y = y + b_ref[0]
  if use_silu:
    y = y * jax.nn.sigmoid(y)                 # SiLU in f32 (EUP slot, ~free)
  out_ref[0] = y.astype(out_ref.dtype)


def _tiled_per_head_linear(x_heads, w, b, *, use_silu, out_dtype,
                           tile_cap=2048, vmem_limit_bytes=48 * 1024 * 1024):
  """Per-head  act(x @ W + b)  with the weight streamed in lane-dense tiles.

  x_heads: (Hx, B, K) bf16, Hx in {1, num_heads}.  Hx == 1 means the same
           activations are shared by every head (broadcast via index_map).
  w      : (num_heads, K, N)
  b      : (num_heads, 1, N)
  returns: (num_heads, B, N) in `out_dtype`
  """
  num_heads, K, N = w.shape
  Hx, B, Kx = x_heads.shape
  assert Kx == K and Hx in (1, num_heads)

  # Lane-dense output tile, multiple of 128.
  t = min(int(tile_cap), _round_up(N, 128))
  t = max(128, (t // 128) * 128)
  n_pad = _round_up(N, t)
  if n_pad != N:
    # Production code would pad the weights once at init instead of per call.
    w = jnp.pad(w, ((0, 0), (0, 0), (0, n_pad - N)))
    b = jnp.pad(b, ((0, 0), (0, 0), (0, n_pad - N)))

  if Hx == num_heads:
    x_map = lambda h, j: (h, 0, 0)
  else:                                       # shared input, broadcast to heads
    x_map = lambda h, j: (0, 0, 0)

  out = pl.pallas_call(
      functools.partial(_head_linear_kernel, use_silu=use_silu),
      out_shape=jax.ShapeDtypeStruct((num_heads, B, n_pad), out_dtype),
      grid=(num_heads, n_pad // t),
      in_specs=[
          pl.BlockSpec((1, B, K), x_map),
          pl.BlockSpec((1, K, t), lambda h, j: (h, 0, j)),
          pl.BlockSpec((1, 1, t), lambda h, j: (h, 0, j)),
      ],
      out_specs=pl.BlockSpec((1, B, t), lambda h, j: (h, 0, j)),
      compiler_params=pltpu.CompilerParams(
          dimension_semantics=("parallel", "parallel"),
          vmem_limit_bytes=vmem_limit_bytes),
  )(x_heads.astype(jnp.bfloat16), w.astype(jnp.bfloat16), b.astype(jnp.float32))

  if n_pad != N:
    out = out[:, :, :N]
  return out


def medusa_heads_forward(last_hidden, w1, b1, w2, b2, *,
                         tile_cap=2048,
                         vmem_limit_bytes=48 * 1024 * 1024):
  """Apply all Medusa heads to the last-token hidden state.

  last_hidden: (B, H)
  w1: (num_heads, L, H, H)   b1: (num_heads, L, 1, H)
  w2: (num_heads, H, V)      b2: (num_heads, 1, V)
  returns: (num_heads, B, V) float32 logits
  """
  num_heads = w2.shape[0]
  L = w1.shape[1] if (w1 is not None and w1.ndim == 4) else 0

  # x carries either the shared hidden (leading dim 1) or per-head hidden.
  x = last_hidden.astype(jnp.bfloat16)[None]                    # (1, B, H)

  # ---- Stage 1: per-head hidden->hidden SiLU trunk (hoisted out of the
  #               vocab loop; weight streamed in (H, T) tiles) --------------
  for l in range(L):
    x = _tiled_per_head_linear(
        x, w1[:, l], b1[:, l], use_silu=True, out_dtype=jnp.bfloat16,
        tile_cap=tile_cap, vmem_limit_bytes=vmem_limit_bytes)   # (NH, B, H)

  # ---- Stage 2: vocab-tiled streaming projection  x @ W2_tile + b2 --------
  logits = _tiled_per_head_linear(
      x, w2, b2, use_silu=False, out_dtype=jnp.float32,
      tile_cap=tile_cap, vmem_limit_bytes=vmem_limit_bytes)     # (NH, B, V)
  return logits


class MedusaShardedModelJAX:
  """Minimal JAX/Pallas port of the Medusa-head path of MedusaShardedModel."""

  def __init__(self, hidden_size, vocab_size, medusa_num_heads=4,
               medusa_num_layers=1, key=None):
    self.hidden_size = hidden_size
    self.vocab_size = vocab_size
    self.medusa_heads = medusa_num_heads
    self.medusa_layers = medusa_num_layers

    if key is None:
      key = jax.random.PRNGKey(0)
    k1, k2, k3, k4 = jax.random.split(key, 4)
    H, V, NH, L = hidden_size, vocab_size, medusa_num_heads, medusa_num_layers

    # Deterministic init mimicking nn.Linear's U(-1/sqrt(fan_in), 1/sqrt(fan_in)).
    # Weights stored already transposed to (in, out), in bf16 for streaming;
    # biases stay f32 (added after the f32 accumulation).
    s_h = 1.0 / (H ** 0.5)
    self.w1 = jax.random.uniform(
        k1, (NH, L, H, H), jnp.float32, -s_h, s_h).astype(jnp.bfloat16)
    self.b1 = jax.random.uniform(k2, (NH, L, 1, H), jnp.float32, -s_h, s_h)
    self.w2 = jax.random.uniform(
        k3, (NH, H, V), jnp.float32, -s_h, s_h).astype(jnp.bfloat16)
    self.b2 = jax.random.uniform(k4, (NH, 1, V), jnp.float32, -s_h, s_h)

    # jit the whole head stack so pads/slices fuse and there is one dispatch.
    self._fwd = jax.jit(medusa_heads_forward)

  def generate(self, hidden_state):
    """hidden_state: (B, S, H).  Returns (hidden_state, medusa_logits) where
    medusa_logits is (num_heads, B, 1, V) — one logit slab per Medusa head
    for the last position (matching head(hidden_state[:, -1:]))."""
    last_hidden = hidden_state[:, -1, :]                          # (B, H)
    logits = self._fwd(last_hidden, self.w1, self.b1,
                       self.w2, self.b2)                          # (NH, B, V)
    medusa_logits = logits[:, :, None, :]                         # (NH, B, 1, V)
    return hidden_state, medusa_logits


def _reference(hidden_state, w1, b1, w2, b2):
  """Pure-jnp reference mirroring the kernel's bf16/f32 dtype path."""
  x = hidden_state[:, -1, :].astype(jnp.bfloat16)                 # (B, H)
  outs = []
  for h in range(w1.shape[0]):
    y = x
    for l in range(w1.shape[1]):
      z = jnp.dot(y, w1[h, l].astype(jnp.bfloat16),
                  preferred_element_type=jnp.float32) + b1[h, l]
      z = z * jax.nn.sigmoid(z)
      y = z.astype(jnp.bfloat16)
    outs.append(jnp.dot(y, w2[h].astype(jnp.bfloat16),
                        preferred_element_type=jnp.float32) + b2[h])
  return jnp.stack(outs, axis=0)


if __name__ == "__main__":
  B, S, H, V = 2, 8, 32, 512     # small synthetic shapes (vocab shrunk from 32000)
  NUM_HEADS, NUM_LAYERS = 4, 1

  key = jax.random.PRNGKey(0)
  k_x, k_p = jax.random.split(key)
  hidden_state = jax.random.normal(k_x, (B, S, H), jnp.float32)

  model = MedusaShardedModelJAX(hidden_size=H, vocab_size=V,
                                medusa_num_heads=NUM_HEADS,
                                medusa_num_layers=NUM_LAYERS, key=k_p)

  hs_out, medusa_logits = model.generate(hidden_state)
  medusa_logits = jax.block_until_ready(medusa_logits)

  ref = _reference(hidden_state, model.w1, model.b1, model.w2, model.b2)
  assert medusa_logits.shape == (NUM_HEADS, B, 1, V)
  assert hs_out.shape == hidden_state.shape
  err = float(jnp.max(jnp.abs(medusa_logits[:, :, 0, :] - ref)))
  assert jnp.allclose(medusa_logits[:, :, 0, :], ref, atol=5e-3, rtol=5e-3), err

  print("KERNEL_OK")
</pallas_src>

<mosaic_0001>
module attributes {stable_mosaic.version = 11 : i64} {
  func.func @_head_linear_kernel(%arg0: i32, %arg1: i32, %arg2: memref<1x2x32xbf16, #tpu.memory_space<vmem>>, %arg3: memref<1x32x512xbf16, #tpu.memory_space<vmem>>, %arg4: memref<1x1x512xf32, #tpu.memory_space<vmem>>, %arg5: memref<1x2x512xf32, #tpu.memory_space<vmem>>) attributes {dimension_semantics = [#tpu.dimension_semantics<parallel>, #tpu.dimension_semantics<parallel>], iteration_bounds = array<i64: 4, 1>, scalar_prefetch = 0 : i64, scratch_operands = 0 : i64, tpu.core_type = #tpu.core_type<tc>, window_params = [{transform_indices = @transform_0, window_bounds = array<i64: 1, 2, 32>}, {transform_indices = @transform_1, window_bounds = array<i64: 1, 32, 512>}, {transform_indices = @transform_2, window_bounds = array<i64: 1, 1, 512>}, {transform_indices = @transform_3, window_bounds = array<i64: 1, 2, 512>}]} {
    %c0 = arith.constant 0 : index
    %c0_0 = arith.constant 0 : index
    %c0_1 = arith.constant 0 : index
    %0 = vector.load %arg2[%c0, %c0_0, %c0_1] : memref<1x2x32xbf16, #tpu.memory_space<vmem>>, vector<1x2x32xbf16>
    %1 = vector.shape_cast %0 : vector<1x2x32xbf16> to vector<2x32xbf16>
    %c0_2 = arith.constant 0 : index
    %c0_3 = arith.constant 0 : index
    %c0_4 = arith.constant 0 : index
    %2 = vector.load %arg3[%c0_2, %c0_3, %c0_4] : memref<1x32x512xbf16, #tpu.memory_space<vmem>>, vector<1x32x512xbf16>
    %3 = vector.shape_cast %2 : vector<1x32x512xbf16> to vector<32x512xbf16>
    %cst = arith.constant dense<0.000000e+00> : vector<2x512xf32>
    %4 = tpu.matmul %1, %3, %cst {dimension_numbers = #tpu.dot_dimension_numbers<[1], [0], [0], [1], [0, 0, 1, 1], [], []>} : vector<2x32xbf16>, vector<32x512xbf16>, vector<2x512xf32> -> vector<2x512xf32>
    %c0_5 = arith.constant 0 : index
    %c0_6 = arith.constant 0 : index
    %c0_7 = arith.constant 0 : index
    %5 = vector.load %arg4[%c0_5, %c0_6, %c0_7] : memref<1x1x512xf32, #tpu.memory_space<vmem>>, vector<1x1x512xf32>
    %6 = vector.shape_cast %5 : vector<1x1x512xf32> to vector<1x512xf32>
    %7 = vector.broadcast %6 : vector<1x512xf32> to vector<2x512xf32>
    %8 = arith.addf %4, %7 : vector<2x512xf32>
    %c0_8 = arith.constant 0 : index
    %c0_9 = arith.constant 0 : index
    %c0_10 = arith.constant 0 : index
    %9 = vector.load %arg5[%c0_8, %c0_9, %c0_10] : memref<1x2x512xf32, #tpu.memory_space<vmem>>, vector<1x2x512xf32>
    %10 = vector.shape_cast %9 : vector<1x2x512xf32> to vector<2x512xf32>
    %11 = vector.shape_cast %8 : vector<2x512xf32> to vector<1x2x512xf32>
    tpu.vector_store %arg5[%c0_8, %c0_9, %c0_10], %11 {strides = array<i32>} : memref<1x2x512xf32, #tpu.memory_space<vmem>>, vector<1x2x512xf32>,
    return
  }
  func.func @transform_0(%arg0: i32, %arg1: i32) -> (i32, i32, i32) {
    %c0_i32 = arith.constant 0 : i32
    %c0_i32_0 = arith.constant 0 : i32
    %c0_i32_1 = arith.constant 0 : i32
    return %arg0, %c0_i32, %c0_i32_0 : i32, i32, i32
  }
  func.func @transform_1(%arg0: i32, %arg1: i32) -> (i32, i32, i32) {
    %c0_i32 = arith.constant 0 : i32
    %c0_i32_0 = arith.constant 0 : i32
    return %arg0, %c0_i32, %arg1 : i32, i32, i32
  }
  func.func @transform_2(%arg0: i32, %arg1: i32) -> (i32, i32, i32) {
    %c0_i32 = arith.constant 0 : i32
    %c0_i32_0 = arith.constant 0 : i32
    return %arg0, %c0_i32, %arg1 : i32, i32, i32
  }
  func.func @transform_3(%arg0: i32, %arg1: i32) -> (i32, i32, i32) {
    %c0_i32 = arith.constant 0 : i32
    %c0_i32_0 = arith.constant 0 : i32
    return %arg0, %c0_i32, %arg1 : i32, i32, i32
  }
}

module attributes {stable_mosaic.version = 11 : i64} {
  func.func @_head_linear_kernel(%arg0: i32, %arg1: i32, %arg2: memref<1x2x32xbf16, #tpu.memory_space<vmem>>, %arg3: memref<1x32x128xbf16, #tpu.memory_space<vmem>>, %arg4: memref<1x1x128xf32, #tpu.memory_space<vmem>>, %arg5: memref<1x2x128xbf16, #tpu.memory_space<vmem>>) attributes {dimension_semantics = [#tpu.dimension_semantics<parallel>, #tpu.dimension_semantics<parallel>], iteration_bounds = array<i64: 4, 1>, scalar_prefetch = 0 : i64, scratch_operands = 0 : i64, tpu.core_type = #tpu.core_type<tc>, window_params = [{pipeline_mode = #tpu.pipeline_mode<synchronous>, transform_indices = @transform_0, window_bounds = array<i64: 1, 2, 32>}, {transform_indices = @transform_1, window_bounds = array<i64: 1, 32, 128>}, {transform_indices = @transform_2, window_bounds = array<i64: 1, 1, 128>}, {transform_indices = @transform_3, window_bounds = array<i64: 1, 2, 128>}]} {
    %c0 = arith.constant 0 : index
    %c0_0 = arith.constant 0 : index
    %c0_1 = arith.constant 0 : index
    %0 = vector.load %arg2[%c0, %c0_0, %c0_1] : memref<1x2x32xbf16, #tpu.memory_space<vmem>>, vector<1x2x32xbf16>
    %1 = vector.shape_cast %0 : vector<1x2x32xbf16> to vector<2x32xbf16>
    %c0_2 = arith.constant 0 : index
    %c0_3 = arith.constant 0 : index
    %c0_4 = arith.constant 0 : index
    %2 = vector.load %arg3[%c0_2, %c0_3, %c0_4] : memref<1x32x128xbf16, #tpu.memory_space<vmem>>, vector<1x32x128xbf16>
    %3 = vector.shape_cast %2 : vector<1x32x128xbf16> to vector<32x128xbf16>
    %cst = arith.constant dense<0.000000e+00> : vector<2x128xf32>
    %4 = tpu.matmul %1, %3, %cst {dimension_numbers = #tpu.dot_dimension_numbers<[1], [0], [0], [1], [0, 0, 1, 1], [], []>} : vector<2x32xbf16>, vector<32x128xbf16>, vector<2x128xf32> -> vector<2x128xf32>
    %c0_5 = arith.constant 0 : index
    %c0_6 = arith.constant 0 : index
    %c0_7 = arith.constant 0 : index
    %5 = vector.load %arg4[%c0_5, %c0_6, %c0_7] : memref<1x1x128xf32, #tpu.memory_space<vmem>>, vector<1x1x128xf32>
    %6 = vector.shape_cast %5 : vector<1x1x128xf32> to vector<1x128xf32>
    %7 = vector.broadcast %6 : vector<1x128xf32> to vector<2x128xf32>
    %8 = arith.addf %4, %7 : vector<2x128xf32>
    %9 = arith.negf %8 : vector<2x128xf32>
    %10 = math.exp %9 : vector<2x128xf32>
    %cst_8 = arith.constant 1.000000e+00 : f32
    %11 = vector.broadcast %cst_8 : f32 to vector<2x128xf32>
    %12 = arith.addf %11, %10 : vector<2x128xf32>
    %13 = arith.divf %11, %12 : vector<2x128xf32>
    %14 = arith.mulf %8, %13 : vector<2x128xf32>
    %15 = arith.truncf %14 : vector<2x128xf32> to vector<2x128xbf16>
    %c0_9 = arith.constant 0 : index
    %c0_10 = arith.constant 0 : index
    %c0_11 = arith.constant 0 : index
    %16 = vector.load %arg5[%c0_9, %c0_10, %c0_11] : memref<1x2x128xbf16, #tpu.memory_space<vmem>>, vector<1x2x128xbf16>
    %17 = vector.shape_cast %16 : vector<1x2x128xbf16> to vector<2x128xbf16>
    %18 = vector.shape_cast %15 : vector<2x128xbf16> to vector<1x2x128xbf16>
    tpu.vector_store %arg5[%c0_9, %c0_10, %c0_11], %18 {strides = array<i32>} : memref<1x2x128xbf16, #tpu.memory_space<vmem>>, vector<1x2x128xbf16>,
    return
  }
  func.func @transform_0(%arg0: i32, %arg1: i32) -> (i32, i32, i32) {
    %c0_i32 = arith.constant 0 : i32
    %c0_i32_0 = arith.constant 0 : i32
    %c0_i32_1 = arith.constant 0 : i32
    %c0_i32_2 = arith.constant 0 : i32
    return %c0_i32, %c0_i32_0, %c0_i32_1 : i32, i32, i32
  }
  func.func @transform_1(%arg0: i32, %arg1: i32) -> (i32, i32, i32) {
    %c0_i32 = arith.constant 0 : i32
    %c0_i32_0 = arith.constant 0 : i32
    return %arg0, %c0_i32, %arg1 : i32, i32, i32
  }
  func.func @transform_2(%arg0: i32, %arg1: i32) -> (i32, i32, i32) {
    %c0_i32 = arith.constant 0 : i32
    %c0_i32_0 = arith.constant 0 : i32
    return %arg0, %c0_i32, %arg1 : i32, i32, i32
  }
  func.func @transform_3(%arg0: i32, %arg1: i32) -> (i32, i32, i32) {
    %c0_i32 = arith.constant 0 : i32
    %c0_i32_0 = arith.constant 0 : i32
    return %arg0, %c0_i32, %arg1 : i32, i32, i32
  }
}

</mosaic_0001>

<llo_original>
// kernel: medusa_heads_forward.3
$region0: #{medusa_heads_forward.3}
  #allocation0 [shape = 'u32[]', space=smem, size = 0x4, offset = 0x4, fixed_abs, tag = 'smem constant byte address 0x4 - core index']
  #allocation1 [shape = 'u32[72,128]{1,0:T(1,128)}', space=vmem, size = 0x9000, scoped, tag = 'internal scratch']
  %s0 = inlined_call_operand.vmem [shape: bf16[4,2,32], index: 0, kind: input, shape index: {}]
  %s1 = inlined_call_operand.hbm [shape: bf16[4,32,512], index: 1, kind: input, shape index: {}]
  %s2 = inlined_call_operand.vmem [shape: f32[4,1,512], index: 2, kind: input, shape index: {}]
  %s3 = inlined_call_operand.hbm [shape: f32[4,2,512], index: 3, kind: output, shape index: {}]
  %s4 = sld [smem:[#allocation0]]
  $region49: #{medusa_heads_forward.3} parent=0
    _
  %s6 = ssub.s32 1, %s4
  %s7 = scalar_select 0, %s6, %s4
  $region1: #{medusa_heads_forward.3} parent=0
    #allocation2 [shape = 'u8[65536]{0}', space=vmem, size = 0x10000, scoped, tag = 'input window, operand 1']
    #allocation3 [shape = 's32[2]{0}', space=sflag, size = 0x8, scoped, tag = 'scoped memory for medusa_heads_forward.3']
    #allocation4 [shape = 's32[2]{0}', space=sflag, size = 0x8, scoped, tag = 'scoped memory for medusa_heads_forward.3']
    #allocation5 [shape = 'u8[8192]{0}', space=vmem, size = 0x2000, scoped, tag = 'output window, operand 0']
    %8 = vsyncpa [#allocation3], 0
    %s9 = scalar_lea.sflag [#allocation3], 1
    %10 = vsyncpa %s9, 0
    %11 = vsyncpa [#allocation4], 0
    %s12 = scalar_lea.sflag [#allocation4], 1
    %13 = vsyncpa %s12, 0
    loop: start=0, step=1, limit=6
    $region2: #{medusa_heads_forward.3} parent=1 // loop_pre_header
      _
    $region3: #{medusa_heads_forward.3} parent=1 // loop_header
      %s15 = sphi 0, %s19
      %p16 = scmp.ge.s32.totalorder %s15, 6
      %s22 = sphi 0, %s34
      %s23 = sphi 0, %s30
      %s24 = sphi 0, %s22
      %s25 = sphi 0, %s23
      %s26 = sphi 0, %s24
      %s27 = sphi 0, %s25
      %s37 = sphi 0, %s39
      %s40 = sphi 0, %s37
      %s41 = sphi 0, %s40
      %s57 = sphi 0, %s41
      %s65 = sphi 0, %s67
      %s68 = sphi 0, %s65
      %s69 = sphi 0, %s68
      %s85 = sphi 0, %s69
      %s93 = sphi 0, %s95
      %s96 = sphi 0, %s93
      %s97 = sphi 0, %s96
      %s113 = sphi 0, %s97
      %s121 = sphi 0, %s123
      %s124 = sphi 0, %s121
      %s125 = sphi 0, %s124
      %s141 = sphi 0, %s125
    $region4: #{medusa_heads_forward.3} parent=1 // loop_header_branch
      %18 = sbr.rel (%p16) target = $region8
    $region5: #{medusa_heads_forward.3} parent=1 // loop_body
      %s20 = ssub.s32 %s15, 1
      %s21 = ssub.s32 %s15, 2
      %s28 = sadd.s32 1, %s23
      %p29 = scmp.ge.s32.totalorder %s28, 1
      %s30 = scalar_select %p29, 0, %s28
      %s31 = sadd.s32 1, %s22
      %s32 = scalar_select %p29, %s31, %s22
      %p33 = scmp.ge.s32.totalorder %s32, 4
      %s34 = scalar_select %p33, 0, %s32
      %s35 = ssub.s32 %s22, %s34
      %p36 = scmp.eq.s32.totalorder %s35, 0
      %s38 = sadd.s32 %s37, 1
      %s39 = scalar_select %p36, %s37, %s38
      %p42 = pneg %p36
      %p43 = scmp.eq.s32.totalorder %s15, 3
      %p44 = por %p42, %p43
      %p45 = scmp.ne.s32.totalorder %s37, %s40
      %p46 = scmp.eq.s32.totalorder %s15, 0
      %p47 = por %p45, %p46
      %p48 = scmp.ne.s32.totalorder %s37, %s40
      %p49 = scmp.eq.s32.totalorder %s20, 3
      %p50 = por %p48, %p49
      %p51 = scmp.ne.s32.totalorder %s40, %s41
      %p52 = scmp.eq.s32.totalorder %s20, 0
      %p53 = por %p51, %p52
      %p54 = scmp.ne.s32.totalorder %s40, %s41
      %p55 = scmp.eq.s32.totalorder %s21, 3
      %p56 = por %p54, %p55
      %p58 = scmp.ne.s32.totalorder %s41, %s57
      %p59 = scmp.eq.s32.totalorder %s21, 0
      %p60 = por %p58, %p59
      %s61 = ssub.s32 %s22, %s34
      %s62 = ssub.s32 %s23, %s30
      %s63 = sor.u32 %s61, %s62
      %p64 = scmp.eq.s32.totalorder %s63, 0
      %s66 = sadd.s32 %s65, 1
      %s67 = scalar_select %p64, %s65, %s66
      %p70 = pneg %p64
      %p71 = scmp.eq.s32.totalorder %s15, 3
      %p72 = por %p70, %p71
      %p73 = scmp.ne.s32.totalorder %s65, %s68
      %p74 = scmp.eq.s32.totalorder %s15, 0
      %p75 = por %p73, %p74
      %p76 = scmp.ne.s32.totalorder %s65, %s68
      %p77 = scmp.eq.s32.totalorder %s20, 3
      %p78 = por %p76, %p77
      %p79 = scmp.ne.s32.totalorder %s68, %s69
      %p80 = scmp.eq.s32.totalorder %s20, 0
      %p81 = por %p79, %p80
      %p82 = scmp.ne.s32.totalorder %s68, %s69
      %p83 = scmp.eq.s32.totalorder %s21, 3
      %p84 = por %p82, %p83
      %p86 = scmp.ne.s32.totalorder %s69, %s85
      %p87 = scmp.eq.s32.totalorder %s21, 0
      %p88 = por %p86, %p87
      %s89 = ssub.s32 %s22, %s34
      %s90 = ssub.s32 %s23, %s30
      %s91 = sor.u32 %s89, %s90
      %p92 = scmp.eq.s32.totalorder %s91, 0
      %s94 = sadd.s32 %s93, 1
      %s95 = scalar_select %p92, %s93, %s94
      %p98 = pneg %p92
      %p99 = scmp.eq.s32.totalorder %s15, 3
      %p100 = por %p98, %p99
      %p101 = scmp.ne.s32.totalorder %s93, %s96
      %p102 = scmp.eq.s32.totalorder %s15, 0
      %p103 = por %p101, %p102
      %p104 = scmp.ne.s32.totalorder %s93, %s96
      %p105 = scmp.eq.s32.totalorder %s20, 3
      %p106 = por %p104, %p105
      %p107 = scmp.ne.s32.totalorder %s96, %s97
      %p108 = scmp.eq.s32.totalorder %s20, 0
      %p109 = por %p107, %p108
      %p110 = scmp.ne.s32.totalorder %s96, %s97
      %p111 = scmp.eq.s32.totalorder %s21, 3
      %p112 = por %p110, %p111
      %p114 = scmp.ne.s32.totalorder %s97, %s113
      %p115 = scmp.eq.s32.totalorder %s21, 0
      %p116 = por %p114, %p115
      %s117 = ssub.s32 %s22, %s34
      %s118 = ssub.s32 %s23, %s30
      %s119 = sor.u32 %s117, %s118
      %p120 = scmp.eq.s32.totalorder %s119, 0
      %s122 = sadd.s32 %s121, 1
      %s123 = scalar_select %p120, %s121, %s122
      %p126 = pneg %p120
      %p127 = scmp.eq.s32.totalorder %s15, 3
      %p128 = por %p126, %p127
      %p129 = scmp.ne.s32.totalorder %s121, %s124
      %p130 = scmp.eq.s32.totalorder %s15, 0
      %p131 = por %p129, %p130
      %p132 = scmp.ne.s32.totalorder %s121, %s124
      %p133 = scmp.eq.s32.totalorder %s20, 3
      %p134 = por %p132, %p133
      %p135 = scmp.ne.s32.totalorder %s124, %s125
      %p136 = scmp.eq.s32.totalorder %s20, 0
      %p137 = por %p135, %p136
      %p138 = scmp.ne.s32.totalorder %s124, %s125
      %p139 = scmp.eq.s32.totalorder %s21, 3
      %p140 = por %p138, %p139
      %p142 = scmp.ne.s32.totalorder %s125, %s141
      %p143 = scmp.eq.s32.totalorder %s21, 0
      %p144 = por %p142, %p143
      %p145 = scmp.le.s32.totalorder 1, %s15
      %p146 = scmp.lt.s32.totalorder %s15, 5
      %p147 = pnand %p145, %p146
      %p148 = pneg %p147
      // Predicated region
      $region9: #{medusa_heads_forward.3} parent=5 // pred_check
        _
      $region10: #{medusa_heads_forward.3} parent=5 // pred_check_branch
        %150 = sbr.rel (%p147) target = $region12
      $region11: #{medusa_heads_forward.3} parent=5 // pred_region
        %s151 = ssub.s32 %s15, 1
      $region12: #{medusa_heads_forward.3} parent=5 // pred_fallthru
        _
      %p152 = scmp.lt.s32.totalorder %s15, 4
      // Predicated region
      $region13: #{medusa_heads_forward.3} parent=5 // pred_check
        %p153 = pneg %p152
      $region14: #{medusa_heads_forward.3} parent=5 // pred_check_branch
        %155 = sbr.rel (%p153) target = $region16
      $region15: #{medusa_heads_forward.3} parent=5 // pred_region
        // Predicated region
        $region17: #{medusa_heads_forward.3} parent=15 // pred_check
          %p156 = pneg %p47
        $region18: #{medusa_heads_forward.3} parent=15 // pred_check_branch
          %158 = sbr.rel (%p156) target = $region20
        $region19: #{medusa_heads_forward.3} parent=15 // pred_region
          %p159 = scmp.lt.s32.totalorder %s22, 3
          %s160 = scalar_select %p159, %s22, 3
          %s161 = scalar_lea.vmem %s0, %s160
        $region20: #{medusa_heads_forward.3} parent=15 // pred_fallthru
          _
        // Predicated region
        $region21: #{medusa_heads_forward.3} parent=15 // pred_check
          %p162 = pneg %p75
        $region22: #{medusa_heads_forward.3} parent=15 // pred_check_branch
          %164 = sbr.rel (%p162) target = $region24
        $region23: #{medusa_heads_forward.3} parent=15 // pred_region
          %s165 = sand.u32 %s65, 1
          %s166 = scalar_lea.sflag [#allocation3], %s165
          %s167 = sand.u32 %s65, 1
          %s168 = smul.addr %s167, 64
          %s169 = scalar_lea.vmem [#allocation2], %s168
          %s170 = smul.u32 4, %s23
          %172 = vsyncadd %s166, 0
          %s173 = smul.addr %s22, 16
          %s174 = sadd.s32 %s170, %s173
          %s175 = smul.addr %s174, 4
          %s176 = scalar_lea.hbm %s1, %s175
          %s177 = sshll.u32 %s176, 4
          %s178 = int_to_ptr.hbm [resolvable:$true] %s177
          %s179 = sshll.u32 %s169, 4
          %s180 = int_to_ptr.vmem [resolvable:$true] %s179
          %185 = dma.hbm_to_vmem [thread:$0]  %s178, 1024, %s180, %s166, 256, 256, 16
        $region24: #{medusa_heads_forward.3} parent=15 // pred_fallthru
          _
        // Predicated region
        $region25: #{medusa_heads_forward.3} parent=15 // pred_check
          %p186 = pneg %p103
        $region26: #{medusa_heads_forward.3} parent=15 // pred_check_branch
          %188 = sbr.rel (%p186) target = $region28
        $region27: #{medusa_heads_forward.3} parent=15 // pred_region
          %s189 = smul.u32 4, %s23
          %p190 = scmp.lt.s32.totalorder %s22, 3
          %s191 = scalar_select %p190, %s22, 3
          %p192 = scmp.lt.s32.totalorder %s189, 3
          %s193 = scalar_select %p192, %s189, 3
          %s194 = smul.addr %s191, 4
          %s195 = sadd.s32 %s193, %s194
          %s196 = scalar_lea.vmem %s2, %s195
          %s197 = smul.u32 4, %s23
        $region28: #{medusa_heads_forward.3} parent=15 // pred_fallthru
          _
      $region16: #{medusa_heads_forward.3} parent=5 // pred_fallthru
        _
      %p198 = scmp.le.s32.totalorder 1, %s15
      %p199 = scmp.lt.s32.totalorder %s15, 5
      %p200 = pnand %p198, %p199
      %p201 = pneg %p200
      // Predicated region
      $region29: #{medusa_heads_forward.3} parent=5 // pred_check
        _
      $region30: #{medusa_heads_forward.3} parent=5 // pred_check_branch
        %203 = sbr.rel (%p200) target = $region32
      $region31: #{medusa_heads_forward.3} parent=5 // pred_region
        %s204 = ssub.s32 %s15, 1
        %s205 = sand.u32 %s68, 1
        %s206 = scalar_lea.sflag [#allocation3], %s205
        %s207 = sand.u32 %s68, 1
        %s208 = smul.addr %s207, 64
        %s209 = scalar_lea.vmem [#allocation2], %s208
        // Predicated region
        $region33: #{medusa_heads_forward.3} parent=31 // pred_check
          %p210 = pneg %p81
        $region34: #{medusa_heads_forward.3} parent=31 // pred_check_branch
          %212 = sbr.rel (%p210) target = $region36
        $region35: #{medusa_heads_forward.3} parent=31 // pred_region
          %214 = dma.done %s206, 1024
        $region36: #{medusa_heads_forward.3} parent=31 // pred_fallthru
          _
        %p215 = scmp.lt.s32.totalorder %s24, 3
        %s216 = scalar_select %p215, %s24, 3
        %s217 = scalar_lea.vmem %s0, %s216
        %p218 = pneg %p53
        %p219 = pneg %p50
        %s220 = sand.u32 %s68, 1
        %s221 = scalar_lea.sflag [#allocation3], %s220
        %s222 = sand.u32 %s68, 1
        %s223 = smul.addr %s222, 64
        %s224 = scalar_lea.vmem [#allocation2], %s223
        %p225 = pneg %p81
        %p226 = pneg %p78
        %s227 = smul.u32 4, %s25
        %p228 = scmp.lt.s32.totalorder %s24, 3
        %s229 = scalar_select %p228, %s24, 3
        %p230 = scmp.lt.s32.totalorder %s227, 3
        %s231 = scalar_select %p230, %s227, 3
        %s232 = smul.addr %s229, 4
        %s233 = sadd.s32 %s231, %s232
        %s234 = scalar_lea.vmem %s2, %s233
        %p235 = pneg %p109
        %p236 = pneg %p106
        %p237 = pneg %p137
        %p238 = pneg %p134
        %s239 = sand.u32 %s124, 1
        %s240 = scalar_lea.sflag [#allocation4], %s239
        %s241 = sand.u32 %s124, 1
        %s242 = smul.addr %s241, 8
        %s243 = scalar_lea.vmem [#allocation5], %s242
        %p244 = scmp.lt.s32.totalorder %s24, 3
        %s245 = scalar_select %p244, %s24, 3
        %s246 = scalar_lea.vmem %s0, %s245
        %s247 = smul.u32 4, %s25
        %s248 = smul.u32 4, %s25
        %p249 = scmp.lt.s32.totalorder %s24, 3
        %s250 = scalar_select %p249, %s24, 3
        %p251 = scmp.lt.s32.totalorder %s248, 3
        %s252 = scalar_select %p251, %s248, 3
        %s253 = smul.addr %s250, 4
        %s254 = sadd.s32 %s252, %s253
        %s255 = scalar_lea.vmem %s2, %s254
        %s256 = smul.u32 4, %s25
        %s257 = smul.u32 4, %s25
        %v259 = vld [vmem:[%s246] sm:$0x1]
        %v260 = vld [vmem:[%s209] sm:$0xff]
        %v261 = vld [vmem:[%s209 + $0x8] sm:$0xff]
        %v262 = vld [vmem:[%s209 + $0x10] sm:$0xff]
        %v263 = vld [vmem:[%s209 + $0x18] sm:$0xff]
        %v264 = vld [vmem:[%s209 + $0x20] sm:$0xff]
        %v265 = vld [vmem:[%s209 + $0x28] sm:$0xff]
        %v266 = vld [vmem:[%s209 + $0x30] sm:$0xff]
        %v267 = vld [vmem:[%s209 + $0x38] sm:$0xff]
        %v268 = vld [vmem:[%s255] sm:$0xf]
        %v270 = vperm.slane %v268, 0
        %v271 = vperm.slane %v268, 1
        %v272 = vperm.slane %v268, 2
        %v273 = vperm.slane %v268, 3
        %v286 = vunpack.c.l.b16 %v260
        %v287 = vunpack.c.h.b16 %v260
        %v288 = vunpack.c.l.b16 %v261
        %v289 = vunpack.c.h.b16 %v261
        %v290 = vunpack.c.l.b16 %v262
        %v291 = vunpack.c.h.b16 %v262
        %v292 = vunpack.c.l.b16 %v263
        %v293 = vunpack.c.h.b16 %v263
        %v294 = vunpack.c.l.b16 %v264
        %v295 = vunpack.c.h.b16 %v264
        %v296 = vunpack.c.l.b16 %v265
        %v297 = vunpack.c.h.b16 %v265
        %v298 = vunpack.c.l.b16 %v266
        %v299 = vunpack.c.h.b16 %v266
        %v300 = vunpack.c.l.b16 %v267
        %v301 = vunpack.c.h.b16 %v267
        %v302 = vpack.c.b16 %v290, %v286
        %v303 = vpack.c.b16 %v291, %v287
        %v304 = vpack.c.b16 %v292, %v288
        %v305 = vpack.c.b16 %v293, %v289
        %v306 = vpack.c.b16 %v298, %v294
        %v307 = vpack.c.b16 %v299, %v295
        %v308 = vpack.c.b16 %v300, %v296
        %v309 = vpack.c.b16 %v301, %v297
        %vm318 = vcmask 261120
        %v320 = vsel %vm318, %v259, 0
        %322 = vmatpush.bf16.msra.mxu0 0
        %323 = vmatpush.bf16.msra.mxu0 0
        %324 = vmatpush.bf16.msra.mxu0 0
        %325 = vmatpush.bf16.msra.mxu0 0
        %326 = vmatpush.bf16.msra.mxu0 0
        %327 = vmatpush.bf16.msra.mxu0 0
        %328 = vmatpush.bf16.msra.mxu0 %v306
        %329 = vmatpush.bf16.msra.mxu0 %v302
        %330 = vmatmul.bf16.gmra.mxu0 %v320
        %v331 = vpop.f32.mrf.mxu0
        %v332 = vadd.f32 %v270, %v331
        %v333 = vpop.f32.mrf.mxu0
        %334 = vdwg.mxu0
        %335 = vmatpush.bf16.msra.mxu0 0
        %336 = vmatpush.bf16.msra.mxu0 0
        %337 = vmatpush.bf16.msra.mxu0 0
        %338 = vmatpush.bf16.msra.mxu0 0
        %339 = vmatpush.bf16.msra.mxu0 0
        %340 = vmatpush.bf16.msra.mxu0 0
        %341 = vmatpush.bf16.msra.mxu0 %v307
        %342 = vmatpush.bf16.msra.mxu0 %v303
        %343 = vmatmul.bf16.gmra.mxu0 %v320
        %v344 = vpop.f32.mrf.mxu0
        %v345 = vadd.f32 %v271, %v344
        %v346 = vpop.f32.mrf.mxu0
        %347 = vdwg.mxu0
        %348 = vmatpush.bf16.msra.mxu0 0
        %349 = vmatpush.bf16.msra.mxu0 0
        %350 = vmatpush.bf16.msra.mxu0 0
        %351 = vmatpush.bf16.msra.mxu0 0
        %352 = vmatpush.bf16.msra.mxu0 0
        %353 = vmatpush.bf16.msra.mxu0 0
        %354 = vmatpush.bf16.msra.mxu0 %v308
        %355 = vmatpush.bf16.msra.mxu0 %v304
        %356 = vmatmul.bf16.gmra.mxu0 %v320
        %v357 = vpop.f32.mrf.mxu0
        %v358 = vadd.f32 %v272, %v357
        %v359 = vpop.f32.mrf.mxu0
        %360 = vdwg.mxu0
        %361 = vmatpush.bf16.msra.mxu0 0
        %362 = vmatpush.bf16.msra.mxu0 0
        %363 = vmatpush.bf16.msra.mxu0 0
        %364 = vmatpush.bf16.msra.mxu0 0
        %365 = vmatpush.bf16.msra.mxu0 0
        %366 = vmatpush.bf16.msra.mxu0 0
        %367 = vmatpush.bf16.msra.mxu0 %v309
        %368 = vmatpush.bf16.msra.mxu0 %v305
        %369 = vmatmul.bf16.gmra.mxu0 %v320
        %v370 = vpop.f32.mrf.mxu0
        %v371 = vadd.f32 %v273, %v370
        %v372 = vpop.f32.mrf.mxu0
        %373 = vdwg.mxu0
        %v378 = vrot.slane %v345, 6
        %v379 = vrot.slane %v358, 4
        %v380 = vrot.slane %v371, 2
        %vm381 = vcmask 1041408
        %v382 = vsel %vm381, %v332, %v378
        %vm383 = vcmask 1045508
        %v384 = vsel %vm383, %v379, %v380
        %vm385 = vcmask 1043456
        %v386 = vsel %vm385, %v382, %v384
        %388 = vst [vmem:[%s243] sm:$0xff] %v386
        %s389 = sand.u32 %s124, 1
        %s390 = scalar_lea.sflag [#allocation4], %s389
        %s391 = sand.u32 %s124, 1
        %s392 = smul.addr %s391, 8
        %s393 = scalar_lea.vmem [#allocation5], %s392
        // Predicated region
        $region37: #{medusa_heads_forward.3} parent=31 // pred_check
          %p394 = pneg %p134
        $region38: #{medusa_heads_forward.3} parent=31 // pred_check_branch
          %396 = sbr.rel (%p394) target = $region40
        $region39: #{medusa_heads_forward.3} parent=31 // pred_region
          %s397 = smul.u32 4, %s25
          %399 = vsyncadd %s390, 0
          %s400 = smul.addr %s24, 4
          %s401 = sadd.s32 %s397, %s400
          %s402 = smul.addr %s401, 2
          %s403 = scalar_lea.hbm %s3, %s402
          %s405 = sshll.u32 %s393, 4
          %s406 = int_to_ptr.vmem [resolvable:$true] %s405
          %s407 = sshll.u32 %s403, 4
          %s408 = int_to_ptr.hbm [resolvable:$true] %s407
          %410 = dma.vmem_to_hbm [thread:$0]  %s406, 128, %s408, %s390
        $region40: #{medusa_heads_forward.3} parent=31 // pred_fallthru
          _
      $region32: #{medusa_heads_forward.3} parent=5 // pred_fallthru
        _
      %p411 = scmp.le.s32.totalorder 2, %s15
      // Predicated region
      $region41: #{medusa_heads_forward.3} parent=5 // pred_check
        %p412 = pneg %p411
      $region42: #{medusa_heads_forward.3} parent=5 // pred_check_branch
        %414 = sbr.rel (%p412) target = $region44
      $region43: #{medusa_heads_forward.3} parent=5 // pred_region
        %s415 = ssub.s32 %s15, 2
        // Predicated region
        $region45: #{medusa_heads_forward.3} parent=43 // pred_check
          %p416 = pneg %p140
        $region46: #{medusa_heads_forward.3} parent=43 // pred_check_branch
          %418 = sbr.rel (%p416) target = $region48
        $region47: #{medusa_heads_forward.3} parent=43 // pred_region
          %s419 = sand.u32 %s125, 1
          %s420 = scalar_lea.sflag [#allocation4], %s419
          %s421 = sand.u32 %s125, 1
          %s422 = smul.addr %s421, 8
          %s423 = scalar_lea.vmem [#allocation5], %s422
          %425 = dma.done %s420, 128
        $region48: #{medusa_heads_forward.3} parent=43 // pred_fallthru
          _
      $region44: #{medusa_heads_forward.3} parent=5 // pred_fallthru
        _
    $region6: #{medusa_heads_forward.3} parent=1 // loop_footer
      %s19 = sadd.s32 1, %s15
    $region7: #{medusa_heads_forward.3} parent=1 // loop_footer_branch
      %14 = sbr.rel target = $region3
    $region8: #{medusa_heads_forward.3} parent=1 // loop_exit
      _
    %426 = vsyncpa [#allocation3], 1
    %s427 = scalar_lea.sflag [#allocation3], 1
    %428 = vsyncpa %s427, 1
    %429 = vsyncpa [#allocation4], 1
    %s430 = scalar_lea.sflag [#allocation4], 1
    %431 = vsyncpa %s430, 1

// kernel: medusa_heads_forward.2
$region0: #{medusa_heads_forward.2}
  #allocation0 [shape = 'u32[]', space=smem, size = 0x4, offset = 0x4, fixed_abs, tag = 'smem constant byte address 0x4 - core index']
  #allocation1 [shape = 'u32[72,128]{1,0:T(1,128)}', space=vmem, size = 0x9000, scoped, tag = 'internal scratch']
  %s0 = inlined_call_operand.vmem [shape: bf16[1,2,32], index: 0, kind: input, shape index: {}]
  %s1 = inlined_call_operand.vmem [shape: bf16[4,32,128], index: 1, kind: input, shape index: {}]
  %s2 = inlined_call_operand.vmem [shape: f32[4,1,128], index: 2, kind: input, shape index: {}]
  %s3 = inlined_call_operand.vmem [shape: bf16[4,2,128], index: 3, kind: output, shape index: {}]
  %s4 = sld [smem:[#allocation0]]
  $region45: #{medusa_heads_forward.2} parent=0
    _
  %s6 = ssub.s32 1, %s4
  %s7 = scalar_select 0, %s6, %s4
  loop: start=0, step=1, limit=6
  $region2: #{medusa_heads_forward.2} parent=0 // loop_pre_header
    _
  $region3: #{medusa_heads_forward.2} parent=0 // loop_header
    %s9 = sphi 0, %s13
    %p10 = scmp.ge.s32.totalorder %s9, 6
    %s16 = sphi 0, %s28
    %s17 = sphi 0, %s24
    %s18 = sphi 0, %s16
    %s19 = sphi 0, %s17
    %s20 = sphi 0, %s18
    %s21 = sphi 0, %s19
    %s29 = sphi 0, %s29
    %s31 = sphi 0, %s29
    %s32 = sphi 0, %s31
    %s46 = sphi 0, %s32
    %s54 = sphi 0, %s56
    %s57 = sphi 0, %s54
    %s58 = sphi 0, %s57
    %s74 = sphi 0, %s58
    %s82 = sphi 0, %s84
    %s85 = sphi 0, %s82
    %s86 = sphi 0, %s85
    %s102 = sphi 0, %s86
    %s110 = sphi 0, %s112
    %s113 = sphi 0, %s110
    %s114 = sphi 0, %s113
    %s130 = sphi 0, %s114
  $region4: #{medusa_heads_forward.2} parent=0 // loop_header_branch
    %12 = sbr.rel (%p10) target = $region8
  $region5: #{medusa_heads_forward.2} parent=0 // loop_body
    %s14 = ssub.s32 %s9, 1
    %s15 = ssub.s32 %s9, 2
    %s22 = sadd.s32 1, %s17
    %p23 = scmp.ge.s32.totalorder %s22, 1
    %s24 = scalar_select %p23, 0, %s22
    %s25 = sadd.s32 1, %s16
    %s26 = scalar_select %p23, %s25, %s16
    %p27 = scmp.ge.s32.totalorder %s26, 4
    %s28 = scalar_select %p27, 0, %s26
    %s30 = sadd.s32 %s29, 1
    %p33 = scmp.eq.s32.totalorder %s9, 3
    %p34 = scmp.ne.s32.totalorder %s29, %s31
    %p35 = scmp.eq.s32.totalorder %s9, 0
    %p36 = por %p34, %p35
    %p37 = scmp.ne.s32.totalorder %s29, %s31
    %p38 = scmp.eq.s32.totalorder %s14, 3
    %p39 = por %p37, %p38
    %p40 = scmp.ne.s32.totalorder %s31, %s32
    %p41 = scmp.eq.s32.totalorder %s14, 0
    %p42 = por %p40, %p41
    %p43 = scmp.ne.s32.totalorder %s31, %s32
    %p44 = scmp.eq.s32.totalorder %s15, 3
    %p45 = por %p43, %p44
    %p47 = scmp.ne.s32.totalorder %s32, %s46
    %p48 = scmp.eq.s32.totalorder %s15, 0
    %p49 = por %p47, %p48
    %s50 = ssub.s32 %s16, %s28
    %s51 = ssub.s32 %s17, %s24
    %s52 = sor.u32 %s50, %s51
    %p53 = scmp.eq.s32.totalorder %s52, 0
    %s55 = sadd.s32 %s54, 1
    %s56 = scalar_select %p53, %s54, %s55
    %p59 = pneg %p53
    %p60 = scmp.eq.s32.totalorder %s9, 3
    %p61 = por %p59, %p60
    %p62 = scmp.ne.s32.totalorder %s54, %s57
    %p63 = scmp.eq.s32.totalorder %s9, 0
    %p64 = por %p62, %p63
    %p65 = scmp.ne.s32.totalorder %s54, %s57
    %p66 = scmp.eq.s32.totalorder %s14, 3
    %p67 = por %p65, %p66
    %p68 = scmp.ne.s32.totalorder %s57, %s58
    %p69 = scmp.eq.s32.totalorder %s14, 0
    %p70 = por %p68, %p69
    %p71 = scmp.ne.s32.totalorder %s57, %s58
    %p72 = scmp.eq.s32.totalorder %s15, 3
    %p73 = por %p71, %p72
    %p75 = scmp.ne.s32.totalorder %s58, %s74
    %p76 = scmp.eq.s32.totalorder %s15, 0
    %p77 = por %p75, %p76
    %s78 = ssub.s32 %s16, %s28
    %s79 = ssub.s32 %s17, %s24
    %s80 = sor.u32 %s78, %s79
    %p81 = scmp.eq.s32.totalorder %s80, 0
    %s83 = sadd.s32 %s82, 1
    %s84 = scalar_select %p81, %s82, %s83
    %p87 = pneg %p81
    %p88 = scmp.eq.s32.totalorder %s9, 3
    %p89 = por %p87, %p88
    %p90 = scmp.ne.s32.totalorder %s82, %s85
    %p91 = scmp.eq.s32.totalorder %s9, 0
    %p92 = por %p90, %p91
    %p93 = scmp.ne.s32.totalorder %s82, %s85
    %p94 = scmp.eq.s32.totalorder %s14, 3
    %p95 = por %p93, %p94
    %p96 = scmp.ne.s32.totalorder %s85, %s86
    %p97 = scmp.eq.s32.totalorder %s14, 0
    %p98 = por %p96, %p97
    %p99 = scmp.ne.s32.totalorder %s85, %s86
    %p100 = scmp.eq.s32.totalorder %s15, 3
    %p101 = por %p99, %p100
    %p103 = scmp.ne.s32.totalorder %s86, %s102
    %p104 = scmp.eq.s32.totalorder %s15, 0
    %p105 = por %p103, %p104
    %s106 = ssub.s32 %s16, %s28
    %s107 = ssub.s32 %s17, %s24
    %s108 = sor.u32 %s106, %s107
    %p109 = scmp.eq.s32.totalorder %s108, 0
    %s111 = sadd.s32 %s110, 1
    %s112 = scalar_select %p109, %s110, %s111
    %p115 = pneg %p109
    %p116 = scmp.eq.s32.totalorder %s9, 3
    %p117 = por %p115, %p116
    %p118 = scmp.ne.s32.totalorder %s110, %s113
    %p119 = scmp.eq.s32.totalorder %s9, 0
    %p120 = por %p118, %p119
    %p121 = scmp.ne.s32.totalorder %s110, %s113
    %p122 = scmp.eq.s32.totalorder %s14, 3
    %p123 = por %p121, %p122
    %p124 = scmp.ne.s32.totalorder %s113, %s114
    %p125 = scmp.eq.s32.totalorder %s14, 0
    %p126 = por %p124, %p125
    %p127 = scmp.ne.s32.totalorder %s113, %s114
    %p128 = scmp.eq.s32.totalorder %s15, 3
    %p129 = por %p127, %p128
    %p131 = scmp.ne.s32.totalorder %s114, %s130
    %p132 = scmp.eq.s32.totalorder %s15, 0
    %p133 = por %p131, %p132
    %p134 = scmp.le.s32.totalorder 1, %s9
    %p135 = scmp.lt.s32.totalorder %s9, 5
    %p136 = pnand %p134, %p135
    %p137 = pneg %p136
    // Predicated region
    $region9: #{medusa_heads_forward.2} parent=5 // pred_check
      _
    $region10: #{medusa_heads_forward.2} parent=5 // pred_check_branch
      %139 = sbr.rel (%p136) target = $region12
    $region11: #{medusa_heads_forward.2} parent=5 // pred_region
      %s140 = ssub.s32 %s9, 1
      // Predicated region
      $region13: #{medusa_heads_forward.2} parent=11 // pred_check
        %p141 = pneg %p42
      $region14: #{medusa_heads_forward.2} parent=11 // pred_check_branch
        %143 = sbr.rel (%p141) target = $region16
      $region15: #{medusa_heads_forward.2} parent=11 // pred_region
        _
      $region16: #{medusa_heads_forward.2} parent=11 // pred_fallthru
        _
    $region12: #{medusa_heads_forward.2} parent=5 // pred_fallthru
      _
    %p144 = scmp.lt.s32.totalorder %s9, 4
    // Predicated region
    $region17: #{medusa_heads_forward.2} parent=5 // pred_check
      %p145 = pneg %p144
    $region18: #{medusa_heads_forward.2} parent=5 // pred_check_branch
      %147 = sbr.rel (%p145) target = $region20
    $region19: #{medusa_heads_forward.2} parent=5 // pred_region
      // Predicated region
      $region21: #{medusa_heads_forward.2} parent=19 // pred_check
        %p148 = pneg %p64
      $region22: #{medusa_heads_forward.2} parent=19 // pred_check_branch
        %150 = sbr.rel (%p148) target = $region24
      $region23: #{medusa_heads_forward.2} parent=19 // pred_region
        %p151 = scmp.lt.s32.totalorder %s16, 3
        %s152 = scalar_select %p151, %s16, 3
        %p153 = scmp.lt.s32.totalorder %s17, 0
        %s154 = scalar_select %p153, %s17, 0
        %s155 = smul.addr %s152, 4
        %s156 = sadd.s32 %s154, %s155
        %s157 = smul.addr %s156, 4
        %s158 = scalar_lea.vmem %s1, %s157
      $region24: #{medusa_heads_forward.2} parent=19 // pred_fallthru
        _
      // Predicated region
      $region25: #{medusa_heads_forward.2} parent=19 // pred_check
        %p159 = pneg %p92
      $region26: #{medusa_heads_forward.2} parent=19 // pred_check_branch
        %161 = sbr.rel (%p159) target = $region28
      $region27: #{medusa_heads_forward.2} parent=19 // pred_region
        %p162 = scmp.lt.s32.totalorder %s16, 3
        %s163 = scalar_select %p162, %s16, 3
        %p164 = scmp.lt.s32.totalorder %s17, 0
        %s165 = scalar_select %p164, %s17, 0
        %s166 = sadd.s32 %s165, %s163
        %s167 = scalar_lea.vmem %s2, %s166
      $region28: #{medusa_heads_forward.2} parent=19 // pred_fallthru
        _
    $region20: #{medusa_heads_forward.2} parent=5 // pred_fallthru
      _
    %p168 = scmp.le.s32.totalorder 1, %s9
    %p169 = scmp.lt.s32.totalorder %s9, 5
    %p170 = pnand %p168, %p169
    %p171 = pneg %p170
    // Predicated region
    $region29: #{medusa_heads_forward.2} parent=5 // pred_check
      _
    $region30: #{medusa_heads_forward.2} parent=5 // pred_check_branch
      %173 = sbr.rel (%p170) target = $region32
    $region31: #{medusa_heads_forward.2} parent=5 // pred_region
      %s174 = ssub.s32 %s9, 1
      %p175 = pneg %p42
      %p176 = pneg %p39
      %p177 = scmp.lt.s32.totalorder %s18, 3
      %s178 = scalar_select %p177, %s18, 3
      %p179 = scmp.lt.s32.totalorder %s19, 0
      %s180 = scalar_select %p179, %s19, 0
      %s181 = smul.addr %s178, 4
      %s182 = sadd.s32 %s180, %s181
      %s183 = smul.addr %s182, 4
      %s184 = scalar_lea.vmem %s1, %s183
      %p185 = pneg %p70
      %p186 = pneg %p67
      %p187 = scmp.lt.s32.totalorder %s18, 3
      %s188 = scalar_select %p187, %s18, 3
      %p189 = scmp.lt.s32.totalorder %s19, 0
      %s190 = scalar_select %p189, %s19, 0
      %s191 = sadd.s32 %s190, %s188
      %s192 = scalar_lea.vmem %s2, %s191
      %p193 = pneg %p98
      %p194 = pneg %p95
      %p195 = pneg %p126
      %p196 = pneg %p123
      %p197 = scmp.lt.s32.totalorder %s18, 3
      %s198 = scalar_select %p197, %s18, 3
      %p199 = scmp.lt.s32.totalorder %s19, 0
      %s200 = scalar_select %p199, %s19, 0
      %s201 = sadd.s32 %s200, %s198
      %s202 = scalar_lea.vmem %s3, %s201
      %p203 = scmp.lt.s32.totalorder %s18, 3
      %s204 = scalar_select %p203, %s18, 3
      %p205 = scmp.lt.s32.totalorder %s19, 0
      %s206 = scalar_select %p205, %s19, 0
      %s207 = smul.addr %s204, 4
      %s208 = sadd.s32 %s206, %s207
      %s209 = smul.addr %s208, 4
      %s210 = scalar_lea.vmem %s1, %s209
      %p211 = scmp.lt.s32.totalorder %s18, 3
      %s212 = scalar_select %p211, %s18, 3
      %p213 = scmp.lt.s32.totalorder %s19, 0
      %s214 = scalar_select %p213, %s19, 0
      %s215 = sadd.s32 %s214, %s212
      %s216 = scalar_lea.vmem %s2, %s215
      %p217 = scmp.lt.s32.totalorder %s18, 3
      %s218 = scalar_select %p217, %s18, 3
      %p219 = scmp.lt.s32.totalorder %s19, 0
      %s220 = scalar_select %p219, %s19, 0
      %s221 = sadd.s32 %s220, %s218
      %s222 = scalar_lea.vmem %s3, %s221
      %v224 = vld [vmem:[%s0] sm:$0x1]
      %v225 = vld [vmem:[%s210] sm:$0xf]
      %v226 = vld [vmem:[%s210 + $0x4] sm:$0xf]
      %v227 = vld [vmem:[%s210 + $0x8] sm:$0xf]
      %v228 = vld [vmem:[%s210 + $0xc] sm:$0xf]
      %v229 = vld [vmem:[%s216] sm:$0x1]
      %v231 = vperm.slane %v229, 0
      %v237 = vunpack.c.l.b16 %v225
      %v238 = vunpack.c.l.b16 %v226
      %v239 = vunpack.c.l.b16 %v227
      %v240 = vunpack.c.l.b16 %v228
      %v241 = vpack.c.b16 %v238, %v237
      %v242 = vpack.c.b16 %v240, %v239
      %vm245 = vcmask 261120
      %v247 = vsel %vm245, %v224, 0
      %249 = vmatpush.bf16.msra.mxu0 0
      %250 = vmatpush.bf16.msra.mxu0 0
      %251 = vmatpush.bf16.msra.mxu0 0
      %252 = vmatpush.bf16.msra.mxu0 0
      %253 = vmatpush.bf16.msra.mxu0 0
      %254 = vmatpush.bf16.msra.mxu0 0
      %255 = vmatpush.bf16.msra.mxu0 %v242
      %256 = vmatpush.bf16.msra.mxu0 %v241
      %257 = vmatmul.bf16.gmra.mxu0 %v247
      %v258 = vpop.f32.mrf.mxu0
      %v259 = vadd.f32 %v231, %v258
      %v260 = vpop.f32.mrf.mxu0
      %261 = vdwg.mxu0
      %v262 = vxor.u32 %v259, 2147483648
      %v263 = vmul.f32 %v262, 1.442695
      %v264 = vpow.pop %v263
      %v265 = vadd.f32 %v264, 1.0
      %v266 = vrcp.pop %v265
      %v267 = vmul.f32 %v265, %v266
      %v268 = vsub.f32 1.0, %v267
      %v269 = vmul.f32 %v266, %v268
      %v270 = vadd.f32 %v266, %v269
      %vm271 = vweird.f32 %v265
      %vm272 = vweird.f32 %v266
      %vm273 = vmor %vm271, %vm272
      %v274 = vsel %vm273, %v266, %v270
      %v275 = vand.u32 2147483647, %v265
      %vm276 = vcmp.eq.f32.partialorder %v275, 8.507059e+37
      %v277 = vand.u32 %v265, 2147483648
      %v278 = vor.u32 1.1754944e-38, %v277
      %v279 = vsel %vm276, %v278, %v274
      %v280 = vmul.f32 1.0, %v279
      %v281 = vmul.f32 %v259, %v280
      %v282 = vpack.c.bf16 %v281, %v281
      %283 = vst [vmem:[%s222] sm:$0x1] %v282
      %p284 = scmp.lt.s32.totalorder %s18, 3
      %s285 = scalar_select %p284, %s18, 3
      %p286 = scmp.lt.s32.totalorder %s19, 0
      %s287 = scalar_select %p286, %s19, 0
      %s288 = sadd.s32 %s287, %s285
      %s289 = scalar_lea.vmem %s3, %s288
      // Predicated region
      $region33: #{medusa_heads_forward.2} parent=31 // pred_check
        %p290 = pneg %p123
      $region34: #{medusa_heads_forward.2} parent=31 // pred_check_branch
        %292 = sbr.rel (%p290) target = $region36
      $region35: #{medusa_heads_forward.2} parent=31 // pred_region
        _
      $region36: #{medusa_heads_forward.2} parent=31 // pred_fallthru
        _
    $region32: #{medusa_heads_forward.2} parent=5 // pred_fallthru
      _
    %p293 = scmp.le.s32.totalorder 2, %s9
    // Predicated region
    $region37: #{medusa_heads_forward.2} parent=5 // pred_check
      %p294 = pneg %p293
    $region38: #{medusa_heads_forward.2} parent=5 // pred_check_branch
      %296 = sbr.rel (%p294) target = $region40
    $region39: #{medusa_heads_forward.2} parent=5 // pred_region
      %s297 = ssub.s32 %s9, 2
      // Predicated region
      $region41: #{medusa_heads_forward.2} parent=39 // pred_check
        %p298 = pneg %p129
      $region42: #{medusa_heads_forward.2} parent=39 // pred_check_branch
        %300 = sbr.rel (%p298) target = $region44
      $region43: #{medusa_heads_forward.2} parent=39 // pred_region
        %p301 = scmp.lt.s32.totalorder %s20, 3
        %s302 = scalar_select %p301, %s20, 3
        %p303 = scmp.lt.s32.totalorder %s21, 0
        %s304 = scalar_select %p303, %s21, 0
        %s305 = sadd.s32 %s304, %s302
        %s306 = scalar_lea.vmem %s3, %s305
      $region44: #{medusa_heads_forward.2} parent=39 // pred_fallthru
        _
    $region40: #{medusa_heads_forward.2} parent=5 // pred_fallthru
      _
  $region6: #{medusa_heads_forward.2} parent=0 // loop_footer
    %s13 = sadd.s32 1, %s9
  $region7: #{medusa_heads_forward.2} parent=0 // loop_footer_branch
    %8 = sbr.rel target = $region3
  $region8: #{medusa_heads_forward.2} parent=0 // loop_exit
    _

</llo_original>
